<compile_context>
chip_gen: v7x
topology: tpu7x:2x2x1
jax: 0.10.0
libtpu: 0.0.40
codegen_flags: <defaults>
</compile_context>

<pallas_src>
import jax
import jax.numpy as jnp
from jax.experimental import pallas as pl
from jax.experimental.pallas import tpu as pltpu  # noqa: F401  (TPU backend)

N_ATTRS = 18      # as in the original celeba MVAE code
HIDDEN = 64
HIDDEN_PAD = 128  # lane-dense hidden width
OUT_PAD = 128     # lane-dense output width
BN_EPS = 1e-5


def _pad8(n):
    return ((n + 7) // 8) * 8


def attribute_decoder_kernel(z_ref, p_ref, o_ref):
    # p_ref row layout (all 128 lanes wide, zero-padded):
    #   [0,            L)              : W1            (L x 128)
    #   [LPAD,         LPAD + 1)       : gamma  (BN weight)
    #   [LPAD + 1,     LPAD + 2)       : beta   (BN bias)
    #   [LPAD + 2,     LPAD + 3)       : b2     (Linear2 bias)
    #   [LPAD + 8,     LPAD + 8 + 128) : W2            (128 x 128)
    L = z_ref.shape[1]
    lpad = _pad8(L)

    z = z_ref[...].astype(jnp.float32)
    w1 = p_ref[0:L, :]
    gamma = p_ref[lpad:lpad + 1, :]
    beta = p_ref[lpad + 1:lpad + 2, :]
    b2 = p_ref[lpad + 2:lpad + 3, :]
    w2 = p_ref[lpad + 8:lpad + 8 + HIDDEN_PAD, :]

    # Linear 1 (bias folded away by the BN mean subtraction): [B, L] @ [L, 128]
    h = jnp.dot(z, w1, preferred_element_type=jnp.float32)

    # BatchNorm1d, training-mode forward: batch mean, biased variance.
    # One-pass variance E[h^2] - mean^2 (clamped against tiny fp negatives).
    inv_b = 1.0 / h.shape[0]
    mean = jnp.sum(h, axis=0, keepdims=True) * inv_b
    ex2 = jnp.sum(h * h, axis=0, keepdims=True) * inv_b
    var = jnp.maximum(ex2 - mean * mean, 0.0)

    h_n = (h - mean) * (jax.lax.rsqrt(var + BN_EPS) * gamma) + beta

    # Swish.
    s = h_n * jax.nn.sigmoid(h_n)

    # Linear 2 + final sigmoid: [B, 128] @ [128, 128] + [1, 128]
    # Output is lane-dense (128 wide); padded columns are sliced off outside.
    logits = jnp.dot(s, w2, preferred_element_type=jnp.float32) + b2
    o_ref[...] = jax.nn.sigmoid(logits)


def pack_params(w1, gamma, beta, w2, b2):
    """One-time repack of all module params into one lane-dense f32 slab."""
    L = w1.shape[0]
    lpad = _pad8(L)
    rows = lpad + 8 + HIDDEN_PAD
    p = jnp.zeros((rows, OUT_PAD), jnp.float32)
    p = p.at[:L, :HIDDEN].set(w1)                                    # Linear1 weight
    p = p.at[lpad, :HIDDEN].set(jnp.ravel(gamma))                    # BN weight
    p = p.at[lpad + 1, :HIDDEN].set(jnp.ravel(beta))                 # BN bias
    p = p.at[lpad + 2, :N_ATTRS].set(jnp.ravel(b2))                  # Linear2 bias
    p = p.at[lpad + 8:lpad + 8 + HIDDEN, :N_ATTRS].set(w2)           # Linear2 weight
    # b1 is intentionally NOT packed: it cancels under training-mode BN.
    return p


def attribute_decoder(z, params):
    B, L = z.shape
    full = lambda shape: pl.BlockSpec(shape, lambda: (0,) * len(shape))

    flops = 2 * B * L * HIDDEN_PAD + 2 * B * HIDDEN_PAD * OUT_PAD + 12 * B * HIDDEN_PAD
    transcendentals = B * HIDDEN_PAD + B * OUT_PAD + HIDDEN_PAD
    bytes_accessed = 4 * (z.size + params.size + B * OUT_PAD)

    out_padded = pl.pallas_call(
        attribute_decoder_kernel,
        out_shape=jax.ShapeDtypeStruct((B, OUT_PAD), jnp.float32),
        in_specs=[
            full(z.shape),
            full(params.shape),
        ],
        out_specs=full((B, OUT_PAD)),
        cost_estimate=pl.CostEstimate(
            flops=flops,
            transcendentals=transcendentals,
            bytes_accessed=bytes_accessed,
        ),
    )(z, params)
    return out_padded[:, :N_ATTRS]


def init_params(key, n_latents):
    # Deterministic synthetic init mimicking nn.Linear's U(-1/sqrt(fan_in), ...)
    k1, k2, k3, k4 = jax.random.split(key, 4)
    lim1 = 1.0 / jnp.sqrt(n_latents)
    w1 = jax.random.uniform(k1, (n_latents, HIDDEN), jnp.float32, -lim1, lim1)
    b1 = jax.random.uniform(k2, (1, HIDDEN), jnp.float32, -lim1, lim1)
    gamma = jnp.ones((1, HIDDEN), jnp.float32)   # BatchNorm1d weight
    beta = jnp.zeros((1, HIDDEN), jnp.float32)   # BatchNorm1d bias
    lim2 = 1.0 / jnp.sqrt(HIDDEN)
    w2 = jax.random.uniform(k3, (HIDDEN, N_ATTRS), jnp.float32, -lim2, lim2)
    b2 = jax.random.uniform(k4, (1, N_ATTRS), jnp.float32, -lim2, lim2)
    return w1, b1, gamma, beta, w2, b2


if __name__ == "__main__":
    batch = 8
    n_latents = 32

    key = jax.random.PRNGKey(0)
    kz, kp = jax.random.split(key)
    z = jax.random.normal(kz, (batch, n_latents), jnp.float32)
    w1, b1, gamma, beta, w2, b2 = init_params(kp, n_latents)

    # One-time param repack (single lane-dense slab, one DMA at call time).
    params = pack_params(w1, gamma, beta, w2, b2)

    out = attribute_decoder(z, params)
    out = jax.block_until_ready(out)

    # Reference in plain JAX, including b1, to validate that dropping b1 in the
    # kernel (it cancels under training-mode BN) is numerically equivalent.
    h = z @ w1 + b1
    mean = h.mean(0, keepdims=True)
    var = ((h - mean) ** 2).mean(0, keepdims=True)
    h_n = (h - mean) / jnp.sqrt(var + BN_EPS) * gamma + beta
    s = h_n * jax.nn.sigmoid(h_n)
    ref = jax.nn.sigmoid(s @ w2 + b2)

    assert out.shape == (batch, N_ATTRS)
    assert jnp.allclose(out, ref, atol=1e-4, rtol=1e-4)

    print("KERNEL_OK")
</pallas_src>

<mosaic_0001>
module attributes {stable_mosaic.version = 11 : i64} {
  func.func @attribute_decoder_kernel(%arg0: memref<8x32xf32, #tpu.memory_space<vmem>>, %arg1: memref<168x128xf32, #tpu.memory_space<vmem>>, %arg2: memref<8x128xf32, #tpu.memory_space<vmem>>) attributes {dimension_semantics = [], scalar_prefetch = 0 : i64, scratch_operands = 0 : i64, tpu.core_type = #tpu.core_type<tc>} {
    %c0 = arith.constant 0 : index
    %c0_0 = arith.constant 0 : index
    %0 = vector.load %arg0[%c0, %c0_0] : memref<8x32xf32, #tpu.memory_space<vmem>>, vector<8x32xf32>
    %c0_1 = arith.constant 0 : index
    %c0_2 = arith.constant 0 : index
    %1 = vector.load %arg1[%c0_1, %c0_2] : memref<168x128xf32, #tpu.memory_space<vmem>>, vector<32x128xf32>
    %c32 = arith.constant 32 : index
    %c0_3 = arith.constant 0 : index
    %2 = vector.load %arg1[%c32, %c0_3] : memref<168x128xf32, #tpu.memory_space<vmem>>, vector<1x128xf32>
    %c33 = arith.constant 33 : index
    %c0_4 = arith.constant 0 : index
    %3 = vector.load %arg1[%c33, %c0_4] : memref<168x128xf32, #tpu.memory_space<vmem>>, vector<1x128xf32>
    %c34 = arith.constant 34 : index
    %c0_5 = arith.constant 0 : index
    %4 = vector.load %arg1[%c34, %c0_5] : memref<168x128xf32, #tpu.memory_space<vmem>>, vector<1x128xf32>
    %c40 = arith.constant 40 : index
    %c0_6 = arith.constant 0 : index
    %5 = vector.load %arg1[%c40, %c0_6] : memref<168x128xf32, #tpu.memory_space<vmem>>, vector<128x128xf32>
    %cst = arith.constant dense<0.000000e+00> : vector<8x128xf32>
    %6 = tpu.matmul %0, %1, %cst {dimension_numbers = #tpu.dot_dimension_numbers<[1], [0], [0], [1], [0, 0, 1, 1], [], []>} : vector<8x32xf32>, vector<32x128xf32>, vector<8x128xf32> -> vector<8x128xf32>
    %cst_7 = arith.constant dense<0.000000e+00> : vector<128xf32>
    %7 = vector.multi_reduction <add>, %6, %cst_7 [0] : vector<8x128xf32> to vector<128xf32>
    %8 = vector.shape_cast %7 : vector<128xf32> to vector<1x128xf32>
    %cst_8 = arith.constant 1.250000e-01 : f32
    %9 = vector.broadcast %cst_8 : f32 to vector<1x128xf32>
    %10 = arith.mulf %8, %9 : vector<1x128xf32>
    %11 = arith.mulf %6, %6 : vector<8x128xf32>
    %cst_9 = arith.constant dense<0.000000e+00> : vector<128xf32>
    %12 = vector.multi_reduction <add>, %11, %cst_9 [0] : vector<8x128xf32> to vector<128xf32>
    %13 = vector.shape_cast %12 : vector<128xf32> to vector<1x128xf32>
    %cst_10 = arith.constant 1.250000e-01 : f32
    %14 = vector.broadcast %cst_10 : f32 to vector<1x128xf32>
    %15 = arith.mulf %13, %14 : vector<1x128xf32>
    %16 = arith.mulf %10, %10 : vector<1x128xf32>
    %17 = arith.subf %15, %16 : vector<1x128xf32>
    %cst_11 = arith.constant 0.000000e+00 : f32
    %18 = vector.broadcast %cst_11 : f32 to vector<1x128xf32>
    %19 = arith.maximumf %17, %18 : vector<1x128xf32>
    %20 = vector.broadcast %10 : vector<1x128xf32> to vector<8x128xf32>
    %21 = arith.subf %6, %20 : vector<8x128xf32>
    %cst_12 = arith.constant 9.99999974E-6 : f32
    %22 = vector.broadcast %cst_12 : f32 to vector<1x128xf32>
    %23 = arith.addf %19, %22 : vector<1x128xf32>
    %24 = math.rsqrt %23 : vector<1x128xf32>
    %25 = arith.mulf %24, %2 : vector<1x128xf32>
    %26 = vector.broadcast %25 : vector<1x128xf32> to vector<8x128xf32>
    %27 = arith.mulf %21, %26 : vector<8x128xf32>
    %28 = vector.broadcast %3 : vector<1x128xf32> to vector<8x128xf32>
    %29 = arith.addf %27, %28 : vector<8x128xf32>
    %30 = arith.negf %29 : vector<8x128xf32>
    %31 = math.exp %30 : vector<8x128xf32>
    %cst_13 = arith.constant 1.000000e+00 : f32
    %32 = vector.broadcast %cst_13 : f32 to vector<8x128xf32>
    %33 = arith.addf %32, %31 : vector<8x128xf32>
    %34 = arith.divf %32, %33 : vector<8x128xf32>
    %35 = arith.mulf %29, %34 : vector<8x128xf32>
    %cst_14 = arith.constant dense<0.000000e+00> : vector<8x128xf32>
    %36 = tpu.matmul %35, %5, %cst_14 {dimension_numbers = #tpu.dot_dimension_numbers<[1], [0], [0], [1], [0, 0, 1, 1], [], []>} : vector<8x128xf32>, vector<128x128xf32>, vector<8x128xf32> -> vector<8x128xf32>
    %37 = vector.broadcast %4 : vector<1x128xf32> to vector<8x128xf32>
    %38 = arith.addf %36, %37 : vector<8x128xf32>
    %39 = arith.negf %38 : vector<8x128xf32>
    %40 = math.exp %39 : vector<8x128xf32>
    %cst_15 = arith.constant 1.000000e+00 : f32
    %41 = vector.broadcast %cst_15 : f32 to vector<8x128xf32>
    %42 = arith.addf %41, %40 : vector<8x128xf32>
    %43 = arith.divf %41, %42 : vector<8x128xf32>
    %c0_16 = arith.constant 0 : index
    %c0_17 = arith.constant 0 : index
    %44 = vector.load %arg2[%c0_16, %c0_17] : memref<8x128xf32, #tpu.memory_space<vmem>>, vector<8x128xf32>
    tpu.vector_store %arg2[%c0_16, %c0_17], %43 {strides = array<i32>} : memref<8x128xf32, #tpu.memory_space<vmem>>, vector<8x128xf32>,
    return
  }
}

</mosaic_0001>

<llo_original>
// kernel: tpu_custom_call.1
$region0: #{tpu_custom_call.1}
  #allocation0 [shape = 'u32[]', space=smem, size = 0x4, offset = 0x4, fixed_abs, tag = 'smem constant byte address 0x4 - core index']
  #allocation1 [shape = 'u32[144,128]{1,0:T(1,128)}', space=vmem, size = 0x12000, scoped, tag = 'internal scratch']
  %s0 = inlined_call_operand.hbm [shape: f32[8,32], index: 0, kind: input, shape index: {}]
  %s1 = inlined_call_operand.hbm [shape: f32[168,128], index: 1, kind: input, shape index: {}]
  %s2 = inlined_call_operand.hbm [shape: f32[8,128], index: 2, kind: output, shape index: {}]
  %s3 = sld [smem:[#allocation0]]
  $region26: #{tpu_custom_call.1} parent=0
    _
  %s5 = ssub.s32 1, %s3
  %s6 = scalar_select 0, %s5, %s3
  $region1: #{tpu_custom_call.1} parent=0
    #allocation2 [shape = 'u8[4096]{0}', space=vmem, size = 0x1000, scoped, tag = 'input window, operand 0, single buffered']
    #allocation3 [shape = 's32[1]{0}', space=sflag, size = 0x4, scoped, tag = 'scoped memory for tpu_custom_call.1']
    #allocation4 [shape = 's32[1]{0}', space=sflag, size = 0x4, scoped, tag = 'scoped memory for tpu_custom_call.1']
    #allocation5 [shape = 'u8[86016]{0}', space=vmem, size = 0x15000, scoped, tag = 'input window, operand 1, single buffered']
    #allocation6 [shape = 's32[1]{0}', space=sflag, size = 0x4, scoped, tag = 'scoped memory for tpu_custom_call.1']
    #allocation7 [shape = 'u8[4096]{0}', space=vmem, size = 0x1000, scoped, tag = 'output window, operand 0, single buffered']
    %7 = vsyncpa [#allocation3], 0
    %8 = vsyncpa [#allocation6], 0
    %9 = vsyncpa [#allocation4], 0
    // Predicated region
    $region2: #{tpu_custom_call.1} parent=1 // pred_check
      _
    $region3: #{tpu_custom_call.1} parent=1 // pred_check_branch
      %11 = sbr.rel (0) target = $region5
    $region4: #{tpu_custom_call.1} parent=1 // pred_region
      %s13 = ssub.s32 128, 128
      %14 = vsyncadd [#allocation3], %s13
      %s16 = sshll.u32 [#allocation2], 4
      %s17 = int_to_ptr.vmem [resolvable:$true] %s16
      %19 = dma.hbm_to_vmem [thread:$0]  %s0, 128, %s17, [#allocation3]
    $region5: #{tpu_custom_call.1} parent=1 // pred_fallthru
      _
    // Predicated region
    $region6: #{tpu_custom_call.1} parent=1 // pred_check
      _
    $region7: #{tpu_custom_call.1} parent=1 // pred_check_branch
      %21 = sbr.rel (0) target = $region9
    $region8: #{tpu_custom_call.1} parent=1 // pred_region
      %s23 = ssub.s32 2688, 2688
      %24 = vsyncadd [#allocation6], %s23
      %s25 = sshll.u32 [#allocation5], 4
      %s26 = int_to_ptr.vmem [resolvable:$true] %s25
      %31 = dma.hbm_to_vmem [thread:$0]  %s1, 2688, %s26, [#allocation6], 128, 128, 8
    $region9: #{tpu_custom_call.1} parent=1 // pred_fallthru
      _
    // Predicated region
    $region10: #{tpu_custom_call.1} parent=1 // pred_check
      _
    $region11: #{tpu_custom_call.1} parent=1 // pred_check_branch
      %33 = sbr.rel (0) target = $region13
    $region12: #{tpu_custom_call.1} parent=1 // pred_region
      %34 = dma.done [#allocation3], 128
    $region13: #{tpu_custom_call.1} parent=1 // pred_fallthru
      _
    // Predicated region
    $region14: #{tpu_custom_call.1} parent=1 // pred_check
      _
    $region15: #{tpu_custom_call.1} parent=1 // pred_check_branch
      %36 = sbr.rel (0) target = $region17
    $region16: #{tpu_custom_call.1} parent=1 // pred_region
      %37 = dma.done [#allocation6], 2688
    $region17: #{tpu_custom_call.1} parent=1 // pred_fallthru
      _
    %v38 = vld [vmem:[#allocation2] sm:$0xff]
    %v39 = vld [vmem:[#allocation5] sm:$0xff]
    %v40 = vld [vmem:[#allocation5 + $0x8] sm:$0xff]
    %v41 = vld [vmem:[#allocation5 + $0x10] sm:$0xff]
    %v42 = vld [vmem:[#allocation5 + $0x18] sm:$0xff]
    %v43 = vld [vmem:[#allocation5 + $0x20] sm:$0x1]
    %v44 = vld [vmem:[#allocation5 + $0x21] sm:$0x1]
    %v45 = vld [vmem:[#allocation5 + $0x22] sm:$0x1]
    %v46 = vld [vmem:[#allocation5 + $0x28] sm:$0xff]
    %v47 = vld [vmem:[#allocation5 + $0x30] sm:$0xff]
    %v48 = vld [vmem:[#allocation5 + $0x38] sm:$0xff]
    %v49 = vld [vmem:[#allocation5 + $0x40] sm:$0xff]
    %v50 = vld [vmem:[#allocation5 + $0x48] sm:$0xff]
    %v51 = vld [vmem:[#allocation5 + $0x50] sm:$0xff]
    %v52 = vld [vmem:[#allocation5 + $0x58] sm:$0xff]
    %v53 = vld [vmem:[#allocation5 + $0x60] sm:$0xff]
    %v54 = vld [vmem:[#allocation5 + $0x68] sm:$0xff]
    %v55 = vld [vmem:[#allocation5 + $0x70] sm:$0xff]
    %v56 = vld [vmem:[#allocation5 + $0x78] sm:$0xff]
    %v57 = vld [vmem:[#allocation5 + $0x80] sm:$0xff]
    %v58 = vld [vmem:[#allocation5 + $0x88] sm:$0xff]
    %v59 = vld [vmem:[#allocation5 + $0x90] sm:$0xff]
    %v60 = vld [vmem:[#allocation5 + $0x98] sm:$0xff]
    %v61 = vld [vmem:[#allocation5 + $0xa0] sm:$0xff]
    %vm62 = vcmask 261120
    %v64 = vsel %vm62, %v38, 0
    %66 = vmatprep.subr.mxu0 0.0
    %67 = vmatpush1.msra.mxu0 %v39
    %68 = vmatprep.subr.mxu0 0.0
    %69 = vmatpush1.msra.mxu0 %v40
    %70 = vmatprep.subr.mxu0 0.0
    %71 = vmatpush1.msra.mxu0 %v41
    %72 = vmatprep.subr.mxu0 0.0
    %73 = vmatpush1.msra.mxu0 %v42
    %74 = vmatprep.subr.mxu0 0.0
    %75 = vmatpush1.msra.mxu0 0.0
    %76 = vmatprep.subr.mxu0 0.0
    %77 = vmatpush1.msra.mxu0 0.0
    %78 = vmatprep.subr.mxu0 0.0
    %79 = vmatpush1.msra.mxu0 0.0
    %80 = vmatprep.subr.mxu0 0.0
    %81 = vmatpush1.msra.mxu0 0.0
    %82 = vmatprep.subr.mxu0 0.0
    %83 = vmatpush1.msra.mxu0 0.0
    %84 = vmatprep.subr.mxu0 0.0
    %85 = vmatpush1.msra.mxu0 0.0
    %86 = vmatprep.subr.mxu0 0.0
    %87 = vmatpush1.msra.mxu0 0.0
    %88 = vmatprep.subr.mxu0 0.0
    %89 = vmatpush1.msra.mxu0 0.0
    %90 = vmatprep.subr.mxu0 0.0
    %91 = vmatpush1.msra.mxu0 0.0
    %92 = vmatprep.subr.mxu0 0.0
    %93 = vmatpush1.msra.mxu0 0.0
    %94 = vmatprep.subr.mxu0 0.0
    %95 = vmatpush1.msra.mxu0 0.0
    %96 = vmatprep.subr.mxu0 0.0
    %97 = vmatpush1.msra.mxu0 0.0
    %98 = vmatprep.subr.mxu0 0.0
    %99 = vmatpush1.msra.mxu0 0.0
    %100 = vmatprep.subr.mxu0 0.0
    %101 = vmatpush1.msra.mxu0 0.0
    %102 = vmatprep.subr.mxu0 0.0
    %103 = vmatpush1.msra.mxu0 0.0
    %104 = vmatprep.subr.mxu0 0.0
    %105 = vmatpush1.msra.mxu0 0.0
    %106 = vmatprep.subr.mxu0 0.0
    %107 = vmatpush1.msra.mxu0 0.0
    %108 = vmatprep.subr.mxu0 0.0
    %109 = vmatpush1.msra.mxu0 0.0
    %110 = vmatprep.subr.mxu0 0.0
    %111 = vmatpush1.msra.mxu0 0.0
    %112 = vmatprep.subr.mxu0 0.0
    %113 = vmatpush1.msra.mxu0 0.0
    %114 = vmatprep.subr.mxu0 0.0
    %115 = vmatpush1.msra.mxu0 0.0
    %116 = vmatprep.subr.mxu0 0.0
    %117 = vmatpush1.msra.mxu0 0.0
    %118 = vmatprep.subr.mxu0 0.0
    %119 = vmatpush1.msra.mxu0 0.0
    %120 = vmatprep.subr.mxu0 0.0
    %121 = vmatpush1.msra.mxu0 0.0
    %122 = vmatprep.subr.mxu0 0.0
    %123 = vmatpush1.msra.mxu0 0.0
    %124 = vmatprep.subr.mxu0 0.0
    %125 = vmatpush1.msra.mxu0 0.0
    %126 = vmatprep.subr.mxu0 0.0
    %127 = vmatpush1.msra.mxu0 0.0
    %128 = vmatprep.subr.mxu0 0.0
    %129 = vmatpush1.msra.mxu0 0.0
    %130 = vmatprep.mubr.f32.mxu0 0.0
    %131 = vmatmul.mubr.f32.gmra.mrb[0].mxu0 %v64
    %v132 = vpop.f32.mrb[0].mxu0
    %v133 = vadd.f32 0.0, %v132
    %v134 = vpop.f32.mrb[0].mxu0
    %135 = vdwg.mxu0
    %v136 = vrot.slane %v133, 4
    %v137 = vadd.f32 %v133, %v136
    %v138 = vrot.slane %v137, 2
    %v139 = vadd.f32 %v137, %v138
    %v140 = vrot.slane %v139, 1
    %v141 = vadd.f32 %v139, %v140
    %v142 = vmul.f32 %v141, 0.125
    %v143 = vmul.f32 %v133, %v133
    %v144 = vrot.slane %v143, 4
    %v145 = vadd.f32 %v143, %v144
    %v146 = vrot.slane %v145, 2
    %v147 = vadd.f32 %v145, %v146
    %v148 = vrot.slane %v147, 1
    %v149 = vadd.f32 %v147, %v148
    %v150 = vmul.f32 %v149, 0.125
    %v151 = vmul.f32 %v142, %v142
    %v152 = vsub.f32 %v150, %v151
    %v153 = vmax.f32 %v152, 0.0
    %v154 = vsub.f32 %v133, %v142
    %v155 = vadd.f32 %v153, 1e-05
    %v156 = vrsqrt.pop %v155
    %v157 = vmul.f32 %v156, %v43
    %v158 = vlaneseq
    %v159 = vshrl.u32 %v158, 7
    %v160 = vsub.s32 0, %v159
    %v161 = vrot.slane %v157, %v160
    %v162 = vmul.f32 %v154, %v161
    %v163 = vlaneseq
    %v164 = vshrl.u32 %v163, 7
    %v165 = vsub.s32 0, %v164
    %v166 = vrot.slane %v44, %v165
    %v167 = vadd.f32 %v162, %v166
    %v168 = vxor.u32 %v167, 2147483648
    %v169 = vmul.f32 %v168, 1.442695
    %v170 = vpow.pop %v169
    %v171 = vadd.f32 %v170, 1.0
    %v172 = vrcp.pop %v171
    %v173 = vmul.f32 1.0, %v172
    %v174 = vmul.f32 %v167, %v173
    %v175 = vlaneseq
    %v176 = vshrl.u32 %v175, 7
    %v177 = vsub.s32 0, %v176
    %v178 = vrot.slane %v45, %v177
    %179 = vmatprep.subr.mxu0 0.0
    %180 = vmatpush1.msra.mxu0 %v46
    %181 = vmatprep.subr.mxu0 0.0
    %182 = vmatpush1.msra.mxu0 %v47
    %183 = vmatprep.subr.mxu0 0.0
    %184 = vmatpush1.msra.mxu0 %v48
    %185 = vmatprep.subr.mxu0 0.0
    %186 = vmatpush1.msra.mxu0 %v49
    %187 = vmatprep.subr.mxu0 0.0
    %188 = vmatpush1.msra.mxu0 %v50
    %189 = vmatprep.subr.mxu0 0.0
    %190 = vmatpush1.msra.mxu0 %v51
    %191 = vmatprep.subr.mxu0 0.0
    %192 = vmatpush1.msra.mxu0 %v52
    %193 = vmatprep.subr.mxu0 0.0
    %194 = vmatpush1.msra.mxu0 %v53
    %195 = vmatprep.subr.mxu0 0.0
    %196 = vmatpush1.msra.mxu0 %v54
    %197 = vmatprep.subr.mxu0 0.0
    %198 = vmatpush1.msra.mxu0 %v55
    %199 = vmatprep.subr.mxu0 0.0
    %200 = vmatpush1.msra.mxu0 %v56
    %201 = vmatprep.subr.mxu0 0.0
    %202 = vmatpush1.msra.mxu0 %v57
    %203 = vmatprep.subr.mxu0 0.0
    %204 = vmatpush1.msra.mxu0 %v58
    %205 = vmatprep.subr.mxu0 0.0
    %206 = vmatpush1.msra.mxu0 %v59
    %207 = vmatprep.subr.mxu0 0.0
    %208 = vmatpush1.msra.mxu0 %v60
    %209 = vmatprep.subr.mxu0 0.0
    %210 = vmatpush1.msra.mxu0 %v61
    %211 = vmatprep.subr.mxu0 0.0
    %212 = vmatpush1.msra.mxu0 0.0
    %213 = vmatprep.subr.mxu0 0.0
    %214 = vmatpush1.msra.mxu0 0.0
    %215 = vmatprep.subr.mxu0 0.0
    %216 = vmatpush1.msra.mxu0 0.0
    %217 = vmatprep.subr.mxu0 0.0
    %218 = vmatpush1.msra.mxu0 0.0
    %219 = vmatprep.subr.mxu0 0.0
    %220 = vmatpush1.msra.mxu0 0.0
    %221 = vmatprep.subr.mxu0 0.0
    %222 = vmatpush1.msra.mxu0 0.0
    %223 = vmatprep.subr.mxu0 0.0
    %224 = vmatpush1.msra.mxu0 0.0
    %225 = vmatprep.subr.mxu0 0.0
    %226 = vmatpush1.msra.mxu0 0.0
    %227 = vmatprep.subr.mxu0 0.0
    %228 = vmatpush1.msra.mxu0 0.0
    %229 = vmatprep.subr.mxu0 0.0
    %230 = vmatpush1.msra.mxu0 0.0
    %231 = vmatprep.subr.mxu0 0.0
    %232 = vmatpush1.msra.mxu0 0.0
    %233 = vmatprep.subr.mxu0 0.0
    %234 = vmatpush1.msra.mxu0 0.0
    %235 = vmatprep.subr.mxu0 0.0
    %236 = vmatpush1.msra.mxu0 0.0
    %237 = vmatprep.subr.mxu0 0.0
    %238 = vmatpush1.msra.mxu0 0.0
    %239 = vmatprep.subr.mxu0 0.0
    %240 = vmatpush1.msra.mxu0 0.0
    %241 = vmatprep.subr.mxu0 0.0
    %242 = vmatpush1.msra.mxu0 0.0
    %243 = vmatprep.mubr.f32.mxu0 0.0
    %244 = vmatmul.mubr.f32.gmra.mrb[0].mxu0 %v174
    %v245 = vpop.f32.mrb[0].mxu0
    %v246 = vadd.f32 %v178, %v245
    %v247 = vpop.f32.mrb[0].mxu0
    %248 = vdwg.mxu0
    %v249 = vxor.u32 %v246, 2147483648
    %v250 = vmul.f32 %v249, 1.442695
    %v251 = vpow.pop %v250
    %v252 = vadd.f32 %v251, 1.0
    %v253 = vrcp.pop %v252
    %v254 = vmul.f32 1.0, %v253
    %255 = vst [vmem:[#allocation7] sm:$0xff] %v254
    // Predicated region
    $region18: #{tpu_custom_call.1} parent=1 // pred_check
      _
    $region19: #{tpu_custom_call.1} parent=1 // pred_check_branch
      %257 = sbr.rel (0) target = $region21
    $region20: #{tpu_custom_call.1} parent=1 // pred_region
      %s259 = ssub.s32 128, 128
      %260 = vsyncadd [#allocation4], %s259
      %s262 = sshll.u32 [#allocation7], 4
      %s263 = int_to_ptr.vmem [resolvable:$true] %s262
      %265 = dma.vmem_to_hbm [thread:$0]  %s263, 128, %s2, [#allocation4]
    $region21: #{tpu_custom_call.1} parent=1 // pred_fallthru
      _
    // Predicated region
    $region22: #{tpu_custom_call.1} parent=1 // pred_check
      _
    $region23: #{tpu_custom_call.1} parent=1 // pred_check_branch
      %267 = sbr.rel (0) target = $region25
    $region24: #{tpu_custom_call.1} parent=1 // pred_region
      %268 = dma.done [#allocation4], 128
    $region25: #{tpu_custom_call.1} parent=1 // pred_fallthru
      _
    %269 = vsyncpa [#allocation3], 1
    %270 = vsyncpa [#allocation6], 1
    %271 = vsyncpa [#allocation4], 1

</llo_original>
